<compile_context>
chip_gen: v6e
topology: v6e:2x2x1
jax: 0.10.0
libtpu: 0.0.40
codegen_flags: <defaults>
</compile_context>

<pallas_src>
import jax
import jax.numpy as jnp
from jax import lax
from jax.experimental import pallas as pl
from jax.experimental.pallas import tpu as pltpu

IN_DIM = 77
HID_DIM = 392
OUT_DIM = 3


def mlp_kernel(x_ref, w1_ref, b1_ref, w2_ref, b2_ref, o_ref):
    # x: (TM, 77), w1: (392, 77), b1: (1, 392), w2: (3, 392), b2: (1, 3)
    x = x_ref[...]

    # h = x @ w1.T  (contract dim 1 of x with dim 1 of w1; MXU-native trans_b)
    h = lax.dot_general(
        x, w1_ref[...],
        dimension_numbers=(((1,), (1,)), ((), ())),
        preferred_element_type=jnp.float32,
    )
    h = h + b1_ref[...]            # f32 bias add (VPU)
    h = jnp.maximum(h, 0.0)        # f32 ReLU (VPU)

    # Feed the second matmul in the compute dtype (bf16 on the bf16 path).
    h = h.astype(w2_ref.dtype)

    # y = h @ w2.T
    y = lax.dot_general(
        h, w2_ref[...],
        dimension_numbers=(((1,), (1,)), ((), ())),
        preferred_element_type=jnp.float32,
    )
    y = y + b2_ref[...]
    o_ref[...] = y.astype(o_ref.dtype)


def net_forward(x, w1, b1, w2, b2, *, compute_dtype=jnp.float32, block_b=512):
    """Forward pass of Net.

    x:  (B, 77)  float32
    w1: (392, 77), b1: (392,), w2: (3, 392), b2: (3,)   (PyTorch Linear layout)
    compute_dtype: jnp.float32 (exact) or jnp.bfloat16 (halves DMA bytes for
                   x / weights; f32 accumulation kept inside the kernel).
    Returns (B, 3) float32.
    """
    B = x.shape[0]

    # Optional narrow-precision cast for the DMA'd operands (biases stay f32).
    xc = x.astype(compute_dtype)
    w1c = w1.astype(compute_dtype)
    w2c = w2.astype(compute_dtype)
    b1r = b1.reshape(1, HID_DIM).astype(jnp.float32)
    b2r = b2.reshape(1, OUT_DIM).astype(jnp.float32)

    # Batch tile: full batch if it is small (a full-dim block always satisfies
    # the (8,128) rule), otherwise the largest multiple-of-8 tile <= block_b.
    if B <= block_b:
        tm = B
    else:
        tm = max(8, (block_b // 8) * 8)
    grid = (pl.cdiv(B, tm),)

    return pl.pallas_call(
        mlp_kernel,
        out_shape=jax.ShapeDtypeStruct((B, OUT_DIM), jnp.float32),
        grid=grid,
        in_specs=[
            pl.BlockSpec((tm, IN_DIM), lambda i: (i, 0)),          # x tile
            pl.BlockSpec((HID_DIM, IN_DIM), lambda i: (0, 0)),     # w1 resident
            pl.BlockSpec((1, HID_DIM), lambda i: (0, 0)),          # b1 resident
            pl.BlockSpec((OUT_DIM, HID_DIM), lambda i: (0, 0)),    # w2 resident
            pl.BlockSpec((1, OUT_DIM), lambda i: (0, 0)),          # b2 resident
        ],
        out_specs=pl.BlockSpec((tm, OUT_DIM), lambda i: (i, 0)),
        compiler_params=pltpu.CompilerParams(
            dimension_semantics=("parallel",),   # megacore sharding on v7x
        ),
    )(xc, w1c, b1r, w2c, b2r)


def init_params(key):
    """Deterministic init mimicking PyTorch Linear's U(-1/sqrt(fan_in), ...)."""
    k1, k2, k3, k4 = jax.random.split(key, 4)
    bound1 = 1.0 / jnp.sqrt(IN_DIM)
    bound2 = 1.0 / jnp.sqrt(HID_DIM)
    w1 = jax.random.uniform(k1, (HID_DIM, IN_DIM), jnp.float32, -bound1, bound1)
    b1 = jax.random.uniform(k2, (HID_DIM,), jnp.float32, -bound1, bound1)
    w2 = jax.random.uniform(k3, (OUT_DIM, HID_DIM), jnp.float32, -bound2, bound2)
    b2 = jax.random.uniform(k4, (OUT_DIM,), jnp.float32, -bound2, bound2)
    return w1, b1, w2, b2


def reference(x, w1, b1, w2, b2):
    return jnp.maximum(x @ w1.T + b1, 0.0) @ w2.T + b2


if __name__ == "__main__":
    key = jax.random.PRNGKey(0)
    kx, kp = jax.random.split(key)
    w1, b1, w2, b2 = init_params(kp)

    # Small-batch check (single grid step, full-batch tile).
    B_small = 8
    x_small = jax.random.normal(kx, (B_small, IN_DIM), jnp.float32)
    out_small = jax.block_until_ready(net_forward(x_small, w1, b1, w2, b2))
    ref_small = reference(x_small, w1, b1, w2, b2)
    assert out_small.shape == (B_small, OUT_DIM)
    assert jnp.allclose(out_small, ref_small, atol=1e-4, rtol=1e-5)

    # Multi-tile check (grid > 1, last tile partial) exercising the pipeline.
    B_big = 300
    x_big = jax.random.normal(kx, (B_big, IN_DIM), jnp.float32)
    out_big = jax.block_until_ready(
        net_forward(x_big, w1, b1, w2, b2, block_b=128))
    ref_big = reference(x_big, w1, b1, w2, b2)
    assert out_big.shape == (B_big, OUT_DIM)
    assert jnp.allclose(out_big, ref_big, atol=1e-4, rtol=1e-5)

    # bf16 DMA / MXU path (f32 accumulation inside the kernel), looser tol.
    out_bf16 = jax.block_until_ready(
        net_forward(x_big, w1, b1, w2, b2, compute_dtype=jnp.bfloat16))
    assert jnp.allclose(out_bf16, ref_big, atol=5e-2, rtol=5e-2)

    print("KERNEL_OK")
</pallas_src>

<mosaic_0001>
module attributes {stable_mosaic.version = 11 : i64} {
  func.func @mlp_kernel(%arg0: i32, %arg1: memref<8x77xf32, #tpu.memory_space<vmem>>, %arg2: memref<392x77xf32, #tpu.memory_space<vmem>>, %arg3: memref<1x392xf32, #tpu.memory_space<vmem>>, %arg4: memref<3x392xf32, #tpu.memory_space<vmem>>, %arg5: memref<1x3xf32, #tpu.memory_space<vmem>>, %arg6: memref<8x3xf32, #tpu.memory_space<vmem>>) attributes {dimension_semantics = [#tpu.dimension_semantics<parallel>], iteration_bounds = array<i64: 1>, scalar_prefetch = 0 : i64, scratch_operands = 0 : i64, tpu.core_type = #tpu.core_type<tc>, window_params = [{transform_indices = @transform_0, window_bounds = array<i64: 8, 77>}, {pipeline_mode = #tpu.pipeline_mode<synchronous>, transform_indices = @transform_1, window_bounds = array<i64: 392, 77>}, {pipeline_mode = #tpu.pipeline_mode<synchronous>, transform_indices = @transform_2, window_bounds = array<i64: 1, 392>}, {pipeline_mode = #tpu.pipeline_mode<synchronous>, transform_indices = @transform_3, window_bounds = array<i64: 3, 392>}, {pipeline_mode = #tpu.pipeline_mode<synchronous>, transform_indices = @transform_4, window_bounds = array<i64: 1, 3>}, {transform_indices = @transform_5, window_bounds = array<i64: 8, 3>}]} {
    %c0 = arith.constant 0 : index
    %c0_0 = arith.constant 0 : index
    %0 = vector.load %arg1[%c0, %c0_0] : memref<8x77xf32, #tpu.memory_space<vmem>>, vector<8x77xf32>
    %c0_1 = arith.constant 0 : index
    %c0_2 = arith.constant 0 : index
    %1 = vector.load %arg2[%c0_1, %c0_2] : memref<392x77xf32, #tpu.memory_space<vmem>>, vector<392x77xf32>
    %cst = arith.constant dense<0.000000e+00> : vector<8x392xf32>
    %2 = tpu.matmul %0, %1, %cst {dimension_numbers = #tpu.dot_dimension_numbers<[1], [1], [0], [0], [0, 0, 1, 0], [], []>} : vector<8x77xf32>, vector<392x77xf32>, vector<8x392xf32> -> vector<8x392xf32>
    %c0_3 = arith.constant 0 : index
    %c0_4 = arith.constant 0 : index
    %3 = vector.load %arg3[%c0_3, %c0_4] : memref<1x392xf32, #tpu.memory_space<vmem>>, vector<1x392xf32>
    %4 = vector.broadcast %3 : vector<1x392xf32> to vector<8x392xf32>
    %5 = arith.addf %2, %4 : vector<8x392xf32>
    %cst_5 = arith.constant 0.000000e+00 : f32
    %6 = vector.broadcast %cst_5 : f32 to vector<8x392xf32>
    %7 = arith.maximumf %5, %6 : vector<8x392xf32>
    %c0_6 = arith.constant 0 : index
    %c0_7 = arith.constant 0 : index
    %8 = vector.load %arg4[%c0_6, %c0_7] : memref<3x392xf32, #tpu.memory_space<vmem>>, vector<3x392xf32>
    %cst_8 = arith.constant dense<0.000000e+00> : vector<8x3xf32>
    %9 = tpu.matmul %7, %8, %cst_8 {dimension_numbers = #tpu.dot_dimension_numbers<[1], [1], [0], [0], [0, 0, 1, 0], [], []>} : vector<8x392xf32>, vector<3x392xf32>, vector<8x3xf32> -> vector<8x3xf32>
    %c0_9 = arith.constant 0 : index
    %c0_10 = arith.constant 0 : index
    %10 = vector.load %arg5[%c0_9, %c0_10] : memref<1x3xf32, #tpu.memory_space<vmem>>, vector<1x3xf32>
    %11 = vector.broadcast %10 : vector<1x3xf32> to vector<8x3xf32>
    %12 = arith.addf %9, %11 : vector<8x3xf32>
    %c0_11 = arith.constant 0 : index
    %c0_12 = arith.constant 0 : index
    %13 = vector.load %arg6[%c0_11, %c0_12] : memref<8x3xf32, #tpu.memory_space<vmem>>, vector<8x3xf32>
    tpu.vector_store %arg6[%c0_11, %c0_12], %12 {strides = array<i32>} : memref<8x3xf32, #tpu.memory_space<vmem>>, vector<8x3xf32>,
    return
  }
  func.func @transform_0(%arg0: i32) -> (i32, i32) {
    %c0_i32 = arith.constant 0 : i32
    %c0_i32_0 = arith.constant 0 : i32
    return %arg0, %c0_i32 : i32, i32
  }
  func.func @transform_1(%arg0: i32) -> (i32, i32) {
    %c0_i32 = arith.constant 0 : i32
    %c0_i32_0 = arith.constant 0 : i32
    %c0_i32_1 = arith.constant 0 : i32
    return %c0_i32, %c0_i32_0 : i32, i32
  }
  func.func @transform_2(%arg0: i32) -> (i32, i32) {
    %c0_i32 = arith.constant 0 : i32
    %c0_i32_0 = arith.constant 0 : i32
    %c0_i32_1 = arith.constant 0 : i32
    return %c0_i32, %c0_i32_0 : i32, i32
  }
  func.func @transform_3(%arg0: i32) -> (i32, i32) {
    %c0_i32 = arith.constant 0 : i32
    %c0_i32_0 = arith.constant 0 : i32
    %c0_i32_1 = arith.constant 0 : i32
    return %c0_i32, %c0_i32_0 : i32, i32
  }
  func.func @transform_4(%arg0: i32) -> (i32, i32) {
    %c0_i32 = arith.constant 0 : i32
    %c0_i32_0 = arith.constant 0 : i32
    %c0_i32_1 = arith.constant 0 : i32
    return %c0_i32, %c0_i32_0 : i32, i32
  }
  func.func @transform_5(%arg0: i32) -> (i32, i32) {
    %c0_i32 = arith.constant 0 : i32
    %c0_i32_0 = arith.constant 0 : i32
    return %arg0, %c0_i32 : i32, i32
  }
}

</mosaic_0001>

<llo_original>
// kernel: tpu_custom_call.1
$region0: #{tpu_custom_call.1}
  #allocation0 [shape = 'u32[]', space=smem, size = 0x4, offset = 0x4, fixed_abs, tag = 'smem constant byte address 0x4 - core index']
  #allocation1 [shape = 'u32[144,128]{1,0:T(1,128)}', space=vmem, size = 0x12000, scoped, tag = 'internal scratch']
  %s0 = inlined_call_operand.vmem [shape: f32[8,77], index: 0, kind: input, shape index: {}]
  %s1 = inlined_call_operand.vmem [shape: f32[392,77], index: 1, kind: input, shape index: {}]
  %s2 = inlined_call_operand.vmem [shape: f32[1,392], index: 2, kind: input, shape index: {}]
  %s3 = inlined_call_operand.vmem [shape: f32[3,392], index: 3, kind: input, shape index: {}]
  %s4 = inlined_call_operand.vmem [shape: f32[1,3], index: 4, kind: input, shape index: {}]
  %s5 = inlined_call_operand.vmem [shape: f32[8,3], index: 5, kind: output, shape index: {}]
  %s6 = sld [smem:[#allocation0]]
  $region30: #{tpu_custom_call.1} parent=0
    _
  %s8 = ssub.s32 1, %s6
  %s9 = scalar_select 0, %s8, %s6
  // Predicated region
  $region2: #{tpu_custom_call.1} parent=0 // pred_check
    _
  $region3: #{tpu_custom_call.1} parent=0 // pred_check_branch
    %11 = sbr.rel (0) target = $region5
  $region4: #{tpu_custom_call.1} parent=0 // pred_region
    _
  $region5: #{tpu_custom_call.1} parent=0 // pred_fallthru
    _
  // Predicated region
  $region6: #{tpu_custom_call.1} parent=0 // pred_check
    _
  $region7: #{tpu_custom_call.1} parent=0 // pred_check_branch
    %13 = sbr.rel (0) target = $region9
  $region8: #{tpu_custom_call.1} parent=0 // pred_region
    _
  $region9: #{tpu_custom_call.1} parent=0 // pred_fallthru
    _
  // Predicated region
  $region10: #{tpu_custom_call.1} parent=0 // pred_check
    _
  $region11: #{tpu_custom_call.1} parent=0 // pred_check_branch
    %15 = sbr.rel (0) target = $region13
  $region12: #{tpu_custom_call.1} parent=0 // pred_region
    _
  $region13: #{tpu_custom_call.1} parent=0 // pred_fallthru
    _
  // Predicated region
  $region14: #{tpu_custom_call.1} parent=0 // pred_check
    _
  $region15: #{tpu_custom_call.1} parent=0 // pred_check_branch
    %17 = sbr.rel (0) target = $region17
  $region16: #{tpu_custom_call.1} parent=0 // pred_region
    _
  $region17: #{tpu_custom_call.1} parent=0 // pred_fallthru
    _
  // Predicated region
  $region18: #{tpu_custom_call.1} parent=0 // pred_check
    _
  $region19: #{tpu_custom_call.1} parent=0 // pred_check_branch
    %19 = sbr.rel (0) target = $region21
  $region20: #{tpu_custom_call.1} parent=0 // pred_region
    _
  $region21: #{tpu_custom_call.1} parent=0 // pred_fallthru
    _
  %v20 = vld [vmem:[%s0] sm:$0xff]
  %v21 = vld [vmem:[%s1] sm:$0xff]
  %v22 = vld [vmem:[%s1 + $0x8] sm:$0xff]
  %v23 = vld [vmem:[%s1 + $0x10] sm:$0xff]
  %v24 = vld [vmem:[%s1 + $0x18] sm:$0xff]
  %v25 = vld [vmem:[%s1 + $0x20] sm:$0xff]
  %v26 = vld [vmem:[%s1 + $0x28] sm:$0xff]
  %v27 = vld [vmem:[%s1 + $0x30] sm:$0xff]
  %v28 = vld [vmem:[%s1 + $0x38] sm:$0xff]
  %v29 = vld [vmem:[%s1 + $0x40] sm:$0xff]
  %v30 = vld [vmem:[%s1 + $0x48] sm:$0xff]
  %v31 = vld [vmem:[%s1 + $0x50] sm:$0xff]
  %v32 = vld [vmem:[%s1 + $0x58] sm:$0xff]
  %v33 = vld [vmem:[%s1 + $0x60] sm:$0xff]
  %v34 = vld [vmem:[%s1 + $0x68] sm:$0xff]
  %v35 = vld [vmem:[%s1 + $0x70] sm:$0xff]
  %v36 = vld [vmem:[%s1 + $0x78] sm:$0xff]
  %v37 = vld [vmem:[%s1 + $0x80] sm:$0xff]
  %v38 = vld [vmem:[%s1 + $0x88] sm:$0xff]
  %v39 = vld [vmem:[%s1 + $0x90] sm:$0xff]
  %v40 = vld [vmem:[%s1 + $0x98] sm:$0xff]
  %v41 = vld [vmem:[%s1 + $0xa0] sm:$0xff]
  %v42 = vld [vmem:[%s1 + $0xa8] sm:$0xff]
  %v43 = vld [vmem:[%s1 + $0xb0] sm:$0xff]
  %v44 = vld [vmem:[%s1 + $0xb8] sm:$0xff]
  %v45 = vld [vmem:[%s1 + $0xc0] sm:$0xff]
  %v46 = vld [vmem:[%s1 + $0xc8] sm:$0xff]
  %v47 = vld [vmem:[%s1 + $0xd0] sm:$0xff]
  %v48 = vld [vmem:[%s1 + $0xd8] sm:$0xff]
  %v49 = vld [vmem:[%s1 + $0xe0] sm:$0xff]
  %v50 = vld [vmem:[%s1 + $0xe8] sm:$0xff]
  %v51 = vld [vmem:[%s1 + $0xf0] sm:$0xff]
  %v52 = vld [vmem:[%s1 + $0xf8] sm:$0xff]
  %v53 = vld [vmem:[%s1 + $0x100] sm:$0xff]
  %v54 = vld [vmem:[%s1 + $0x108] sm:$0xff]
  %v55 = vld [vmem:[%s1 + $0x110] sm:$0xff]
  %v56 = vld [vmem:[%s1 + $0x118] sm:$0xff]
  %v57 = vld [vmem:[%s1 + $0x120] sm:$0xff]
  %v58 = vld [vmem:[%s1 + $0x128] sm:$0xff]
  %v59 = vld [vmem:[%s1 + $0x130] sm:$0xff]
  %v60 = vld [vmem:[%s1 + $0x138] sm:$0xff]
  %v61 = vld [vmem:[%s1 + $0x140] sm:$0xff]
  %v62 = vld [vmem:[%s1 + $0x148] sm:$0xff]
  %v63 = vld [vmem:[%s1 + $0x150] sm:$0xff]
  %v64 = vld [vmem:[%s1 + $0x158] sm:$0xff]
  %v65 = vld [vmem:[%s1 + $0x160] sm:$0xff]
  %v66 = vld [vmem:[%s1 + $0x168] sm:$0xff]
  %v67 = vld [vmem:[%s1 + $0x170] sm:$0xff]
  %v68 = vld [vmem:[%s1 + $0x178] sm:$0xff]
  %v69 = vld [vmem:[%s1 + $0x180] sm:$0xff]
  %v70 = vld [vmem:[%s2] sm:$0xf]
  %v72 = vlaneseq
  %v73 = vshrl.u32 %v72, 7
  %v74 = vsub.s32 0, %v73
  %v75 = vrot.slane %v70, %v74
  %v76 = vlaneseq
  %v77 = vshrl.u32 %v76, 7
  %v78 = vsub.s32 1, %v77
  %v79 = vrot.slane %v70, %v78
  %v80 = vlaneseq
  %v81 = vshrl.u32 %v80, 7
  %v82 = vsub.s32 2, %v81
  %v83 = vrot.slane %v70, %v82
  %v84 = vlaneseq
  %v85 = vshrl.u32 %v84, 7
  %v86 = vsub.s32 3, %v85
  %v87 = vrot.slane %v70, %v86
  %vm92 = vcmask 629760
  %v94 = vsel %vm92, %v20, 0
  %v97 = vsel %vm92, %v21, 0
  %v100 = vsel %vm92, %v22, 0
  %v103 = vsel %vm92, %v23, 0
  %v106 = vsel %vm92, %v24, 0
  %v109 = vsel %vm92, %v25, 0
  %v112 = vsel %vm92, %v26, 0
  %v115 = vsel %vm92, %v27, 0
  %v118 = vsel %vm92, %v28, 0
  %v121 = vsel %vm92, %v29, 0
  %v124 = vsel %vm92, %v30, 0
  %v127 = vsel %vm92, %v31, 0
  %v130 = vsel %vm92, %v32, 0
  %v133 = vsel %vm92, %v33, 0
  %v136 = vsel %vm92, %v34, 0
  %v139 = vsel %vm92, %v35, 0
  %v142 = vsel %vm92, %v36, 0
  %v145 = vsel %vm92, %v37, 0
  %v148 = vsel %vm92, %v38, 0
  %v151 = vsel %vm92, %v39, 0
  %v154 = vsel %vm92, %v40, 0
  %v157 = vsel %vm92, %v41, 0
  %v160 = vsel %vm92, %v42, 0
  %v163 = vsel %vm92, %v43, 0
  %v166 = vsel %vm92, %v44, 0
  %v169 = vsel %vm92, %v45, 0
  %v172 = vsel %vm92, %v46, 0
  %v175 = vsel %vm92, %v47, 0
  %v178 = vsel %vm92, %v48, 0
  %v181 = vsel %vm92, %v49, 0
  %v184 = vsel %vm92, %v50, 0
  %v187 = vsel %vm92, %v51, 0
  %v190 = vsel %vm92, %v52, 0
  %v193 = vsel %vm92, %v53, 0
  %v196 = vsel %vm92, %v54, 0
  %v199 = vsel %vm92, %v55, 0
  %v202 = vsel %vm92, %v56, 0
  %v205 = vsel %vm92, %v57, 0
  %v208 = vsel %vm92, %v58, 0
  %v211 = vsel %vm92, %v59, 0
  %v214 = vsel %vm92, %v60, 0
  %v217 = vsel %vm92, %v61, 0
  %v220 = vsel %vm92, %v62, 0
  %v223 = vsel %vm92, %v63, 0
  %v226 = vsel %vm92, %v64, 0
  %v229 = vsel %vm92, %v65, 0
  %v232 = vsel %vm92, %v66, 0
  %v235 = vsel %vm92, %v67, 0
  %v238 = vsel %vm92, %v68, 0
  %v241 = vsel %vm92, %v69, 0
  %243 = vmatprep.subr.mxu0 0.0
  %244 = vmatpush1.xpose.msra.mxu0 %v142
  %245 = vmatprep.subr.mxu0 0.0
  %246 = vmatpush1.xpose.msra.mxu0 %v139
  %247 = vmatprep.subr.mxu0 0.0
  %248 = vmatpush1.xpose.msra.mxu0 %v136
  %249 = vmatprep.subr.mxu0 0.0
  %250 = vmatpush1.xpose.msra.mxu0 %v133
  %251 = vmatprep.subr.mxu0 0.0
  %252 = vmatpush1.xpose.msra.mxu0 %v130
  %253 = vmatprep.subr.mxu0 0.0
  %254 = vmatpush1.xpose.msra.mxu0 %v127
  %255 = vmatprep.subr.mxu0 0.0
  %256 = vmatpush1.xpose.msra.mxu0 %v124
  %257 = vmatprep.subr.mxu0 0.0
  %258 = vmatpush1.xpose.msra.mxu0 %v121
  %259 = vmatprep.subr.mxu0 0.0
  %260 = vmatpush1.xpose.msra.mxu0 %v118
  %261 = vmatprep.subr.mxu0 0.0
  %262 = vmatpush1.xpose.msra.mxu0 %v115
  %263 = vmatprep.subr.mxu0 0.0
  %264 = vmatpush1.xpose.msra.mxu0 %v112
  %265 = vmatprep.subr.mxu0 0.0
  %266 = vmatpush1.xpose.msra.mxu0 %v109
  %267 = vmatprep.subr.mxu0 0.0
  %268 = vmatpush1.xpose.msra.mxu0 %v106
  %269 = vmatprep.subr.mxu0 0.0
  %270 = vmatpush1.xpose.msra.mxu0 %v103
  %271 = vmatprep.subr.mxu0 0.0
  %272 = vmatpush1.xpose.msra.mxu0 %v100
  %273 = vmatprep.subr.mxu0 0.0
  %274 = vmatpush1.xpose.msra.mxu0 %v97
  %275 = vmatprep.subr.mxu0 0.0
  %276 = vmatpush2.xpose.msra.mxu0 %v190
  %277 = vmatprep.subr.mxu0 0.0
  %278 = vmatpush2.xpose.msra.mxu0 %v187
  %279 = vmatprep.subr.mxu0 0.0
  %280 = vmatpush2.xpose.msra.mxu0 %v184
  %281 = vmatprep.subr.mxu0 0.0
  %282 = vmatpush2.xpose.msra.mxu0 %v181
  %283 = vmatprep.subr.mxu0 0.0
  %284 = vmatpush2.xpose.msra.mxu0 %v178
  %285 = vmatprep.subr.mxu0 0.0
  %286 = vmatpush2.xpose.msra.mxu0 %v175
  %287 = vmatprep.subr.mxu0 0.0
  %288 = vmatpush2.xpose.msra.mxu0 %v172
  %289 = vmatprep.subr.mxu0 0.0
  %290 = vmatpush2.xpose.msra.mxu0 %v169
  %291 = vmatprep.subr.mxu0 0.0
  %292 = vmatpush2.xpose.msra.mxu0 %v166
  %293 = vmatprep.subr.mxu0 0.0
  %294 = vmatpush2.xpose.msra.mxu0 %v163
  %295 = vmatprep.subr.mxu0 0.0
  %296 = vmatpush2.xpose.msra.mxu0 %v160
  %297 = vmatprep.subr.mxu0 0.0
  %298 = vmatpush2.xpose.msra.mxu0 %v157
  %299 = vmatprep.subr.mxu0 0.0
  %300 = vmatpush2.xpose.msra.mxu0 %v154
  %301 = vmatprep.subr.mxu0 0.0
  %302 = vmatpush2.xpose.msra.mxu0 %v151
  %303 = vmatprep.subr.mxu0 0.0
  %304 = vmatpush2.xpose.msra.mxu0 %v148
  %305 = vmatprep.subr.mxu0 0.0
  %306 = vmatpush2.xpose.msra.mxu0 %v145
  %307 = vmatprep.mubr.f32.mxu0 0.0
  %308 = vmatmul.mubr.f32.gmra.mxu0 %v94
  %v309 = vpop.f32.mrf.mxu0
  %v310 = vadd.f32 %v75, %v309
  %v311 = vpop.f32.mrf.mxu0
  %v312 = vadd.f32 %v79, %v311
  %313 = vdwg.mxu0
  %314 = vmatprep.subr.mxu0 0.0
  %315 = vmatpush1.xpose.msra.mxu0 %v238
  %316 = vmatprep.subr.mxu0 0.0
  %317 = vmatpush1.xpose.msra.mxu0 %v235
  %318 = vmatprep.subr.mxu0 0.0
  %319 = vmatpush1.xpose.msra.mxu0 %v232
  %320 = vmatprep.subr.mxu0 0.0
  %321 = vmatpush1.xpose.msra.mxu0 %v229
  %322 = vmatprep.subr.mxu0 0.0
  %323 = vmatpush1.xpose.msra.mxu0 %v226
  %324 = vmatprep.subr.mxu0 0.0
  %325 = vmatpush1.xpose.msra.mxu0 %v223
  %326 = vmatprep.subr.mxu0 0.0
  %327 = vmatpush1.xpose.msra.mxu0 %v220
  %328 = vmatprep.subr.mxu0 0.0
  %329 = vmatpush1.xpose.msra.mxu0 %v217
  %330 = vmatprep.subr.mxu0 0.0
  %331 = vmatpush1.xpose.msra.mxu0 %v214
  %332 = vmatprep.subr.mxu0 0.0
  %333 = vmatpush1.xpose.msra.mxu0 %v211
  %334 = vmatprep.subr.mxu0 0.0
  %335 = vmatpush1.xpose.msra.mxu0 %v208
  %336 = vmatprep.subr.mxu0 0.0
  %337 = vmatpush1.xpose.msra.mxu0 %v205
  %338 = vmatprep.subr.mxu0 0.0
  %339 = vmatpush1.xpose.msra.mxu0 %v202
  %340 = vmatprep.subr.mxu0 0.0
  %341 = vmatpush1.xpose.msra.mxu0 %v199
  %342 = vmatprep.subr.mxu0 0.0
  %343 = vmatpush1.xpose.msra.mxu0 %v196
  %344 = vmatprep.subr.mxu0 0.0
  %345 = vmatpush1.xpose.msra.mxu0 %v193
  %346 = vmatprep.subr.mxu0 0.0
  %347 = vmatpush2.xpose.msra.mxu0 0.0
  %348 = vmatprep.subr.mxu0 0.0
  %349 = vmatpush2.xpose.msra.mxu0 0.0
  %350 = vmatprep.subr.mxu0 0.0
  %351 = vmatpush2.xpose.msra.mxu0 0.0
  %352 = vmatprep.subr.mxu0 0.0
  %353 = vmatpush2.xpose.msra.mxu0 0.0
  %354 = vmatprep.subr.mxu0 0.0
  %355 = vmatpush2.xpose.msra.mxu0 0.0
  %356 = vmatprep.subr.mxu0 0.0
  %357 = vmatpush2.xpose.msra.mxu0 0.0
  %358 = vmatprep.subr.mxu0 0.0
  %359 = vmatpush2.xpose.msra.mxu0 0.0
  %360 = vmatprep.subr.mxu0 0.0
  %361 = vmatpush2.xpose.msra.mxu0 0.0
  %362 = vmatprep.subr.mxu0 0.0
  %363 = vmatpush2.xpose.msra.mxu0 0.0
  %364 = vmatprep.subr.mxu0 0.0
  %365 = vmatpush2.xpose.msra.mxu0 0.0
  %366 = vmatprep.subr.mxu0 0.0
  %367 = vmatpush2.xpose.msra.mxu0 0.0
  %368 = vmatprep.subr.mxu0 0.0
  %369 = vmatpush2.xpose.msra.mxu0 0.0
  %370 = vmatprep.subr.mxu0 0.0
  %371 = vmatpush2.xpose.msra.mxu0 0.0
  %372 = vmatprep.subr.mxu0 0.0
  %373 = vmatpush2.xpose.msra.mxu0 0.0
  %374 = vmatprep.subr.mxu0 0.0
  %375 = vmatpush2.xpose.msra.mxu0 0.0
  %376 = vmatprep.subr.mxu0 0.0
  %377 = vmatpush2.xpose.msra.mxu0 %v241
  %378 = vmatprep.mubr.f32.mxu0 0.0
  %379 = vmatmul.mubr.f32.gmra.mxu0 %v94
  %v380 = vpop.f32.mrf.mxu0
  %v381 = vadd.f32 %v83, %v380
  %v382 = vpop.f32.mrf.mxu0
  %v383 = vadd.f32 %v87, %v382
  %384 = vdwg.mxu0
  %v385 = vmax.f32 %v310, 0.0
  %v386 = vmax.f32 %v312, 0.0
  %v387 = vmax.f32 %v381, 0.0
  %v388 = vmax.f32 %v383, 0.0
  %v389 = vld [vmem:[%s3] sm:$0x77]
  %v390 = vld [vmem:[%s3 + $0x8] sm:$0x77]
  %v391 = vld [vmem:[%s4] sm:$0x1]
  %v393 = vlaneseq
  %v394 = vshrl.u32 %v393, 7
  %v395 = vsub.s32 0, %v394
  %v396 = vrot.slane %v391, %v395
  %v400 = vcombine.high %v389, %v389
  %v401 = vcombine.high %v390, %v390
  %vm403 = vcmask 64512
  %v405 = vsel %vm403, %v388, 0
  %v407 = vsel %vm403, %v401, 0
  %409 = vmatprep.subr.mxu0 0.0
  %410 = vmatpush1.xpose.msra.mxu0 0.0
  %411 = vmatprep.subr.mxu0 0.0
  %412 = vmatpush1.xpose.msra.mxu0 0.0
  %413 = vmatprep.subr.mxu0 0.0
  %414 = vmatpush1.xpose.msra.mxu0 0.0
  %415 = vmatprep.subr.mxu0 0.0
  %416 = vmatpush1.xpose.msra.mxu0 0.0
  %417 = vmatprep.subr.mxu0 0.0
  %418 = vmatpush1.xpose.msra.mxu0 0.0
  %419 = vmatprep.subr.mxu0 0.0
  %420 = vmatpush1.xpose.msra.mxu0 0.0
  %421 = vmatprep.subr.mxu0 0.0
  %422 = vmatpush1.xpose.msra.mxu0 0.0
  %423 = vmatprep.subr.mxu0 0.0
  %424 = vmatpush1.xpose.msra.mxu0 0.0
  %425 = vmatprep.subr.mxu0 0.0
  %426 = vmatpush1.xpose.msra.mxu0 0.0
  %427 = vmatprep.subr.mxu0 0.0
  %428 = vmatpush1.xpose.msra.mxu0 0.0
  %429 = vmatprep.subr.mxu0 0.0
  %430 = vmatpush1.xpose.msra.mxu0 0.0
  %431 = vmatprep.subr.mxu0 0.0
  %432 = vmatpush1.xpose.msra.mxu0 0.0
  %433 = vmatprep.subr.mxu0 0.0
  %434 = vmatpush1.xpose.msra.mxu0 0.0
  %435 = vmatprep.subr.mxu0 0.0
  %436 = vmatpush1.xpose.msra.mxu0 0.0
  %437 = vmatprep.subr.mxu0 0.0
  %438 = vmatpush1.xpose.msra.mxu0 0.0
  %439 = vmatprep.subr.mxu0 %v400
  %440 = vmatpush1.xpose.msra.mxu0 %v389
  %441 = vmatprep.subr.mxu0 0.0
  %442 = vmatpush2.xpose.msra.mxu0 0.0
  %443 = vmatprep.subr.mxu0 0.0
  %444 = vmatpush2.xpose.msra.mxu0 0.0
  %445 = vmatprep.subr.mxu0 0.0
  %446 = vmatpush2.xpose.msra.mxu0 0.0
  %447 = vmatprep.subr.mxu0 0.0
  %448 = vmatpush2.xpose.msra.mxu0 0.0
  %449 = vmatprep.subr.mxu0 0.0
  %450 = vmatpush2.xpose.msra.mxu0 0.0
  %451 = vmatprep.subr.mxu0 0.0
  %452 = vmatpush2.xpose.msra.mxu0 0.0
  %453 = vmatprep.subr.mxu0 0.0
  %454 = vmatpush2.xpose.msra.mxu0 0.0
  %455 = vmatprep.subr.mxu0 0.0
  %456 = vmatpush2.xpose.msra.mxu0 0.0
  %457 = vmatprep.subr.mxu0 0.0
  %458 = vmatpush2.xpose.msra.mxu0 0.0
  %459 = vmatprep.subr.mxu0 0.0
  %460 = vmatpush2.xpose.msra.mxu0 0.0
  %461 = vmatprep.subr.mxu0 0.0
  %462 = vmatpush2.xpose.msra.mxu0 0.0
  %463 = vmatprep.subr.mxu0 0.0
  %464 = vmatpush2.xpose.msra.mxu0 0.0
  %465 = vmatprep.subr.mxu0 0.0
  %466 = vmatpush2.xpose.msra.mxu0 0.0
  %467 = vmatprep.subr.mxu0 0.0
  %468 = vmatpush2.xpose.msra.mxu0 0.0
  %469 = vmatprep.subr.mxu0 0.0
  %470 = vmatpush2.xpose.msra.mxu0 0.0
  %471 = vmatprep.subr.mxu0 0.0
  %472 = vmatpush2.xpose.msra.mxu0 0.0
  %473 = vmatprep.mubr.f32.mxu0 %v386
  %474 = vmatmul.mubr.f32.gmra.mxu0 %v385
  %v475 = vpop.f32.mrf.mxu0
  %v476 = vadd.f32 %v396, %v475
  %v477 = vpop.f32.mrf.mxu0
  %478 = vdwg.mxu0
  %479 = vmatprep.subr.mxu0 0.0
  %480 = vmatpush1.xpose.msra.mxu0 0.0
  %481 = vmatprep.subr.mxu0 0.0
  %482 = vmatpush1.xpose.msra.mxu0 0.0
  %483 = vmatprep.subr.mxu0 0.0
  %484 = vmatpush1.xpose.msra.mxu0 0.0
  %485 = vmatprep.subr.mxu0 0.0
  %486 = vmatpush1.xpose.msra.mxu0 0.0
  %487 = vmatprep.subr.mxu0 0.0
  %488 = vmatpush1.xpose.msra.mxu0 0.0
  %489 = vmatprep.subr.mxu0 0.0
  %490 = vmatpush1.xpose.msra.mxu0 0.0
  %491 = vmatprep.subr.mxu0 0.0
  %492 = vmatpush1.xpose.msra.mxu0 0.0
  %493 = vmatprep.subr.mxu0 0.0
  %494 = vmatpush1.xpose.msra.mxu0 0.0
  %495 = vmatprep.subr.mxu0 0.0
  %496 = vmatpush1.xpose.msra.mxu0 0.0
  %497 = vmatprep.subr.mxu0 0.0
  %498 = vmatpush1.xpose.msra.mxu0 0.0
  %499 = vmatprep.subr.mxu0 0.0
  %500 = vmatpush1.xpose.msra.mxu0 0.0
  %501 = vmatprep.subr.mxu0 0.0
  %502 = vmatpush1.xpose.msra.mxu0 0.0
  %503 = vmatprep.subr.mxu0 0.0
  %504 = vmatpush1.xpose.msra.mxu0 0.0
  %505 = vmatprep.subr.mxu0 0.0
  %506 = vmatpush1.xpose.msra.mxu0 0.0
  %507 = vmatprep.subr.mxu0 0.0
  %508 = vmatpush1.xpose.msra.mxu0 0.0
  %509 = vmatprep.subr.mxu0 %v407
  %510 = vmatpush1.xpose.msra.mxu0 %v390
  %511 = vmatprep.subr.mxu0 0.0
  %512 = vmatpush2.xpose.msra.mxu0 0.0
  %513 = vmatprep.subr.mxu0 0.0
  %514 = vmatpush2.xpose.msra.mxu0 0.0
  %515 = vmatprep.subr.mxu0 0.0
  %516 = vmatpush2.xpose.msra.mxu0 0.0
  %517 = vmatprep.subr.mxu0 0.0
  %518 = vmatpush2.xpose.msra.mxu0 0.0
  %519 = vmatprep.subr.mxu0 0.0
  %520 = vmatpush2.xpose.msra.mxu0 0.0
  %521 = vmatprep.subr.mxu0 0.0
  %522 = vmatpush2.xpose.msra.mxu0 0.0
  %523 = vmatprep.subr.mxu0 0.0
  %524 = vmatpush2.xpose.msra.mxu0 0.0
  %525 = vmatprep.subr.mxu0 0.0
  %526 = vmatpush2.xpose.msra.mxu0 0.0
  %527 = vmatprep.subr.mxu0 0.0
  %528 = vmatpush2.xpose.msra.mxu0 0.0
  %529 = vmatprep.subr.mxu0 0.0
  %530 = vmatpush2.xpose.msra.mxu0 0.0
  %531 = vmatprep.subr.mxu0 0.0
  %532 = vmatpush2.xpose.msra.mxu0 0.0
  %533 = vmatprep.subr.mxu0 0.0
  %534 = vmatpush2.xpose.msra.mxu0 0.0
  %535 = vmatprep.subr.mxu0 0.0
  %536 = vmatpush2.xpose.msra.mxu0 0.0
  %537 = vmatprep.subr.mxu0 0.0
  %538 = vmatpush2.xpose.msra.mxu0 0.0
  %539 = vmatprep.subr.mxu0 0.0
  %540 = vmatpush2.xpose.msra.mxu0 0.0
  %541 = vmatprep.subr.mxu0 0.0
  %542 = vmatpush2.xpose.msra.mxu0 0.0
  %543 = vmatprep.mubr.f32.mxu0 %v405
  %544 = vmatmul.mubr.f32.gmra.mxu0 %v387
  %v545 = vpop.f32.mrf.mxu0
  %v546 = vadd.f32 %v476, %v545
  %v547 = vpop.f32.mrf.mxu0
  %548 = vdwg.mxu0
  %vm549 = vcmask 23552
  %550 = vst.msk [vmem:[%s5] sm:$0xff] %vm549, %v546
  // Predicated region
  $region22: #{tpu_custom_call.1} parent=0 // pred_check
    _
  $region23: #{tpu_custom_call.1} parent=0 // pred_check_branch
    %552 = sbr.rel (0) target = $region25
  $region24: #{tpu_custom_call.1} parent=0 // pred_region
    _
  $region25: #{tpu_custom_call.1} parent=0 // pred_fallthru
    _
  // Predicated region
  $region26: #{tpu_custom_call.1} parent=0 // pred_check
    _
  $region27: #{tpu_custom_call.1} parent=0 // pred_check_branch
    %554 = sbr.rel (0) target = $region29
  $region28: #{tpu_custom_call.1} parent=0 // pred_region
    _
  $region29: #{tpu_custom_call.1} parent=0 // pred_fallthru
    _

</llo_original>
